<compile_context>
chip_gen: v6e
topology: v6e:2x2x1
jax: 0.10.0
libtpu: 0.0.40
codegen_flags: <defaults>
</compile_context>

<pallas_src>
import functools

import jax
import jax.numpy as jnp
import numpy as np
from jax.experimental import pallas as pl
from jax.experimental.pallas import tpu as pltpu


# ------------------------------ fused kernel --------------------------------

def _fused_loss_kernel(pred_ref, tgt_ref, w_ref, recon_ref, rtgt_ref, mask_ref,
                       out_ref,
                       ce_num, ce_den, mod_sum, mod_cnt, racc, nval,
                       *, reconstruction_weight):
    """grid = (n_modalities, n_batch_tiles).

    Per step: accumulate weighted-CE partials (first modality pass only) and this
    modality's masked-MSE partials over the current batch tile.  At the end of a
    modality, apply the `valid_count > 0` gate; at the very last step, combine
    everything into the final scalar loss.
    """
    mod = pl.program_id(0)
    bt = pl.program_id(1)
    n_mods = pl.num_programs(0)
    n_bt = pl.num_programs(1)

    # ---- init global accumulators on the very first grid step ----
    @pl.when(jnp.logical_and(mod == 0, bt == 0))
    def _():
        ce_num[...] = jnp.zeros_like(ce_num)
        ce_den[...] = jnp.zeros_like(ce_den)
        racc[...] = jnp.zeros_like(racc)
        nval[...] = jnp.zeros_like(nval)

    # ---- reset per-modality accumulators at the start of each modality ----
    @pl.when(bt == 0)
    def _():
        mod_sum[...] = jnp.zeros_like(mod_sum)
        mod_cnt[...] = jnp.zeros_like(mod_cnt)

    # ---- weighted cross-entropy partials (first modality pass only) ----
    @pl.when(mod == 0)
    def _():
        pred = pred_ref[...].astype(jnp.float32)              # [tb, C]
        tgt = tgt_ref[...]                                     # [tb, 1] int32
        w = w_ref[...].astype(jnp.float32)                     # [1, C]
        tb, C = pred.shape
        cls = jax.lax.broadcasted_iota(jnp.int32, (tb, C), 1)
        sel = cls == tgt                                       # in-kernel "one-hot"
        m = jnp.max(pred, axis=-1, keepdims=True)
        lse = m + jnp.log(jnp.sum(jnp.exp(pred - m), axis=-1, keepdims=True))
        picked = jnp.sum(jnp.where(sel, pred, 0.0), axis=-1, keepdims=True)
        wi = jnp.sum(jnp.where(sel, w, 0.0), axis=-1, keepdims=True)
        nll = lse - picked                                     # [tb, 1]
        ce_num[...] += jnp.sum(wi * nll)
        ce_den[...] += jnp.sum(wi)

    # ---- masked reconstruction MSE partials for this (modality, batch tile) ----
    recon = recon_ref[0].astype(jnp.float32)                   # [tb, M, D]
    rtgt = rtgt_ref[0].astype(jnp.float32)                     # [tb, D]
    maskf = mask_ref[...].astype(jnp.float32)                  # [tb, M] (0/1)

    # present = modality_mask[:, mod]  (selected via iota compare -> no dynamic
    # lane slice);  combined = modality_mask & present.
    col = jax.lax.broadcasted_iota(jnp.int32, maskf.shape, 1)
    present = jnp.sum(jnp.where(col == mod, maskf, 0.0), axis=-1, keepdims=True)
    combined = maskf * present                                 # [tb, M]

    diff = recon - rtgt[:, None, :]
    mse = jnp.mean(diff * diff, axis=-1)                       # [tb, M]
    mod_sum[...] += jnp.sum(mse * combined)
    mod_cnt[...] += jnp.sum(combined)

    # ---- finish this modality once the whole batch has been reduced ----
    @pl.when(bt == n_bt - 1)
    def _():
        cnt = mod_cnt[...]
        valid = cnt > 0.0
        # Data-dependent `if valid_count > 0:` emulated with where + clamped denom.
        racc[...] += jnp.where(valid, mod_sum[...] / jnp.maximum(cnt, 1.0), 0.0)
        nval[...] += jnp.where(valid, 1.0, 0.0)

    # ---- final combine on the very last grid step ----
    @pl.when(jnp.logical_and(mod == n_mods - 1, bt == n_bt - 1))
    def _():
        rl = racc[...]
        nv = nval[...]
        rl = jnp.where(nv > 0.0, rl / jnp.maximum(nv, 1.0), rl)
        ce = ce_num[...] / ce_den[...]
        out_ref[...] = ce + jnp.float32(reconstruction_weight) * rl


def _pick_batch_tile(batch, max_tile=512):
    """Largest batch tile <= max_tile that divides B (multiple of 8 when tiling)."""
    if batch <= max_tile:
        return batch
    for t in range(max_tile - (max_tile % 8), 7, -8):
        if batch % t == 0:
            return t
    return batch


# ------------------------------ loss wrapper ---------------------------------

def multimodal_loss(predictions, targets, reconstructions, reconstruction_targets,
                    modality_mask, class_weights=None, reconstruction_weight=0.01,
                    max_batch_tile=512):
    """Equivalent of MultimodalLoss.forward((pred, recs, rec_targets, mask), targets)."""
    B, C = predictions.shape
    n_mods = len(reconstructions)

    recon_stack = jnp.stack(reconstructions)                   # [Mods, B, M, D]
    rtgt_stack = jnp.stack(reconstruction_targets)             # [Mods, B, D]
    _, _, M, D = recon_stack.shape

    if class_weights is None:
        class_weights = jnp.ones((C,), dtype=jnp.float32)
    w2d = class_weights.reshape(1, C)                          # native dtype; cast in-kernel
    tgt2d = targets.astype(jnp.int32).reshape(B, 1)            # tiny
    maskf = modality_mask.astype(jnp.float32)                  # tiny [B, M]

    tb = _pick_batch_tile(B, max_batch_tile)
    n_bt = B // tb

    kernel = functools.partial(_fused_loss_kernel,
                               reconstruction_weight=float(reconstruction_weight))

    out = pl.pallas_call(
        kernel,
        grid=(n_mods, n_bt),
        out_shape=jax.ShapeDtypeStruct((1, 1), jnp.float32),
        in_specs=[
            pl.BlockSpec((tb, C), lambda m, b: (b, 0)),             # predictions
            pl.BlockSpec((tb, 1), lambda m, b: (b, 0)),             # int32 targets
            pl.BlockSpec((1, C), lambda m, b: (0, 0)),              # class weights
            pl.BlockSpec((1, tb, M, D), lambda m, b: (m, b, 0, 0)),  # recon stack
            pl.BlockSpec((1, tb, D), lambda m, b: (m, b, 0)),        # recon targets
            pl.BlockSpec((tb, M), lambda m, b: (b, 0)),              # modality mask
        ],
        out_specs=pl.BlockSpec((1, 1), lambda m, b: (0, 0)),
        scratch_shapes=[pltpu.VMEM((1, 1), jnp.float32)] * 6,
        compiler_params=pltpu.CompilerParams(
            # Both grid axes reduce into scalar accumulators -> sequential.
            dimension_semantics=("arbitrary", "arbitrary")),
    )(predictions, tgt2d, w2d, recon_stack, rtgt_stack, maskf)
    return out[0, 0]


# ------------------------------ pure-JAX reference ---------------------------

def multimodal_loss_ref(predictions, targets, reconstructions, reconstruction_targets,
                        modality_mask, class_weights, reconstruction_weight=0.01):
    B, C = predictions.shape
    logp = jax.nn.log_softmax(predictions.astype(jnp.float32), axis=-1)
    nll = -logp[jnp.arange(B), targets]
    wi = class_weights[targets]
    ce = jnp.sum(wi * nll) / jnp.sum(wi)

    mask_f = modality_mask.astype(jnp.float32)
    rl = jnp.float32(0.0)
    nv = jnp.float32(0.0)
    for m, (rec, tgt) in enumerate(zip(reconstructions, reconstruction_targets)):
        mse = jnp.mean((rec - tgt[:, None, :]) ** 2, axis=-1)
        combined = mask_f * mask_f[:, m:m + 1]
        cnt = jnp.sum(combined)
        valid = cnt > 0
        rl = rl + jnp.where(valid, jnp.sum(mse * combined) / jnp.maximum(cnt, 1.0), 0.0)
        nv = nv + jnp.where(valid, 1.0, 0.0)
    rl = jnp.where(nv > 0, rl / jnp.maximum(nv, 1.0), rl)
    return ce + reconstruction_weight * rl


# ----------------------------------- main ------------------------------------

if __name__ == "__main__":
    B, C, M, D = 8, 4, 3, 32   # batch, n_classes, n_modalities, feature dim

    key = jax.random.PRNGKey(0)
    keys = iter(jax.random.split(key, 16))

    predictions = jax.random.normal(next(keys), (B, C), dtype=jnp.float32)
    targets = jax.random.randint(next(keys), (B,), 0, C)
    reconstructions = [jax.random.normal(next(keys), (B, M, D), dtype=jnp.float32)
                       for _ in range(M)]
    reconstruction_targets = [jax.random.normal(next(keys), (B, D), dtype=jnp.float32)
                              for _ in range(M)]
    modality_mask = jax.random.uniform(next(keys), (B, M)) > 0.3

    # Deterministic class weights (CrossEntropyLoss `weight` argument).
    class_weights = jnp.array([1.0, 0.5, 2.0, 1.5], dtype=jnp.float32)

    loss = multimodal_loss(predictions, targets, reconstructions,
                           reconstruction_targets, modality_mask,
                           class_weights, reconstruction_weight=0.01)
    loss = jax.block_until_ready(loss)

    ref = multimodal_loss_ref(predictions, targets, reconstructions,
                              reconstruction_targets, modality_mask,
                              class_weights, reconstruction_weight=0.01)
    assert np.allclose(np.asarray(loss), np.asarray(ref), rtol=1e-5, atol=1e-5), (
        f"pallas={float(loss)} ref={float(ref)}")

    print("KERNEL_OK")
</pallas_src>

<mosaic_0001>
module attributes {stable_mosaic.version = 11 : i64} {
  func.func @_fused_loss_kernel(%arg0: i32, %arg1: i32, %arg2: memref<8x4xf32, #tpu.memory_space<vmem>>, %arg3: memref<8x1xi32, #tpu.memory_space<vmem>>, %arg4: memref<1x4xf32, #tpu.memory_space<vmem>>, %arg5: memref<1x8x3x32xf32, #tpu.memory_space<vmem>>, %arg6: memref<1x8x32xf32, #tpu.memory_space<vmem>>, %arg7: memref<8x3xf32, #tpu.memory_space<vmem>>, %arg8: memref<1x1xf32, #tpu.memory_space<vmem>>, %arg9: memref<1x1xf32, #tpu.memory_space<vmem>>, %arg10: memref<1x1xf32, #tpu.memory_space<vmem>>, %arg11: memref<1x1xf32, #tpu.memory_space<vmem>>, %arg12: memref<1x1xf32, #tpu.memory_space<vmem>>, %arg13: memref<1x1xf32, #tpu.memory_space<vmem>>, %arg14: memref<1x1xf32, #tpu.memory_space<vmem>>) attributes {dimension_semantics = [#tpu.dimension_semantics<arbitrary>, #tpu.dimension_semantics<arbitrary>], iteration_bounds = array<i64: 3, 1>, scalar_prefetch = 0 : i64, scratch_operands = 6 : i64, tpu.core_type = #tpu.core_type<tc>, window_params = [{transform_indices = @transform_0, window_bounds = array<i64: 8, 4>}, {transform_indices = @transform_1, window_bounds = array<i64: 8, 1>}, {pipeline_mode = #tpu.pipeline_mode<synchronous>, transform_indices = @transform_2, window_bounds = array<i64: 1, 4>}, {transform_indices = @transform_3, window_bounds = array<i64: 1, 8, 3, 32>}, {transform_indices = @transform_4, window_bounds = array<i64: 1, 8, 32>}, {transform_indices = @transform_5, window_bounds = array<i64: 8, 3>}, {pipeline_mode = #tpu.pipeline_mode<synchronous>, transform_indices = @transform_6, window_bounds = array<i64: 1, 1>}]} {
    %c0_i32 = arith.constant 0 : i32
    %0 = arith.cmpi eq, %arg0, %c0_i32 : i32
    %c0_i32_0 = arith.constant 0 : i32
    %1 = arith.cmpi eq, %arg1, %c0_i32_0 : i32
    %2 = arith.andi %0, %1 : i1
    %3 = arith.extui %2 : i1 to i32
    %c0_i32_1 = arith.constant 0 : i32
    %4 = arith.cmpi ne, %3, %c0_i32_1 : i32
    scf.if %4 {
      %cst_31 = arith.constant 0.000000e+00 : f32
      %57 = vector.broadcast %cst_31 : f32 to vector<1x1xf32>
      %c0_32 = arith.constant 0 : index
      %c0_33 = arith.constant 0 : index
      %58 = vector.load %arg9[%c0_32, %c0_33] : memref<1x1xf32, #tpu.memory_space<vmem>>, vector<1x1xf32>
      tpu.vector_store %arg9[%c0_32, %c0_33], %57 {strides = array<i32>} : memref<1x1xf32, #tpu.memory_space<vmem>>, vector<1x1xf32>,
      %cst_34 = arith.constant 0.000000e+00 : f32
      %59 = vector.broadcast %cst_34 : f32 to vector<1x1xf32>
      %c0_35 = arith.constant 0 : index
      %c0_36 = arith.constant 0 : index
      %60 = vector.load %arg10[%c0_35, %c0_36] : memref<1x1xf32, #tpu.memory_space<vmem>>, vector<1x1xf32>
      tpu.vector_store %arg10[%c0_35, %c0_36], %59 {strides = array<i32>} : memref<1x1xf32, #tpu.memory_space<vmem>>, vector<1x1xf32>,
      %cst_37 = arith.constant 0.000000e+00 : f32
      %61 = vector.broadcast %cst_37 : f32 to vector<1x1xf32>
      %c0_38 = arith.constant 0 : index
      %c0_39 = arith.constant 0 : index
      %62 = vector.load %arg13[%c0_38, %c0_39] : memref<1x1xf32, #tpu.memory_space<vmem>>, vector<1x1xf32>
      tpu.vector_store %arg13[%c0_38, %c0_39], %61 {strides = array<i32>} : memref<1x1xf32, #tpu.memory_space<vmem>>, vector<1x1xf32>,
      %cst_40 = arith.constant 0.000000e+00 : f32
      %63 = vector.broadcast %cst_40 : f32 to vector<1x1xf32>
      %c0_41 = arith.constant 0 : index
      %c0_42 = arith.constant 0 : index
      %64 = vector.load %arg14[%c0_41, %c0_42] : memref<1x1xf32, #tpu.memory_space<vmem>>, vector<1x1xf32>
      tpu.vector_store %arg14[%c0_41, %c0_42], %63 {strides = array<i32>} : memref<1x1xf32, #tpu.memory_space<vmem>>, vector<1x1xf32>,
    } else {
    }
    %c0_i32_2 = arith.constant 0 : i32
    %5 = arith.cmpi eq, %arg1, %c0_i32_2 : i32
    %6 = arith.extui %5 : i1 to i32
    %c0_i32_3 = arith.constant 0 : i32
    %7 = arith.cmpi ne, %6, %c0_i32_3 : i32
    scf.if %7 {
      %cst_31 = arith.constant 0.000000e+00 : f32
      %57 = vector.broadcast %cst_31 : f32 to vector<1x1xf32>
      %c0_32 = arith.constant 0 : index
      %c0_33 = arith.constant 0 : index
      %58 = vector.load %arg11[%c0_32, %c0_33] : memref<1x1xf32, #tpu.memory_space<vmem>>, vector<1x1xf32>
      tpu.vector_store %arg11[%c0_32, %c0_33], %57 {strides = array<i32>} : memref<1x1xf32, #tpu.memory_space<vmem>>, vector<1x1xf32>,
      %cst_34 = arith.constant 0.000000e+00 : f32
      %59 = vector.broadcast %cst_34 : f32 to vector<1x1xf32>
      %c0_35 = arith.constant 0 : index
      %c0_36 = arith.constant 0 : index
      %60 = vector.load %arg12[%c0_35, %c0_36] : memref<1x1xf32, #tpu.memory_space<vmem>>, vector<1x1xf32>
      tpu.vector_store %arg12[%c0_35, %c0_36], %59 {strides = array<i32>} : memref<1x1xf32, #tpu.memory_space<vmem>>, vector<1x1xf32>,
    } else {
    }
    %c0_i32_4 = arith.constant 0 : i32
    %8 = arith.cmpi eq, %arg0, %c0_i32_4 : i32
    %9 = arith.extui %8 : i1 to i32
    %c0_i32_5 = arith.constant 0 : i32
    %10 = arith.cmpi ne, %9, %c0_i32_5 : i32
    scf.if %10 {
      %c0_31 = arith.constant 0 : index
      %c0_32 = arith.constant 0 : index
      %57 = vector.load %arg2[%c0_31, %c0_32] : memref<8x4xf32, #tpu.memory_space<vmem>>, vector<8x4xf32>
      %c0_33 = arith.constant 0 : index
      %c0_34 = arith.constant 0 : index
      %58 = vector.load %arg3[%c0_33, %c0_34] : memref<8x1xi32, #tpu.memory_space<vmem>>, vector<8x1xi32>
      %c0_35 = arith.constant 0 : index
      %c0_36 = arith.constant 0 : index
      %59 = vector.load %arg4[%c0_35, %c0_36] : memref<1x4xf32, #tpu.memory_space<vmem>>, vector<1x4xf32>
      %60 = tpu.iota {dimensions = array<i32: 1>} : vector<8x4xi32>
      %61 = vector.broadcast %58 : vector<8x1xi32> to vector<8x4xi32>
      %62 = arith.cmpi eq, %60, %61 : vector<8x4xi32>
      %cst_37 = arith.constant dense<0xFF800000> : vector<8xf32>
      %63 = vector.multi_reduction <maximumf>, %57, %cst_37 [1] : vector<8x4xf32> to vector<8xf32>
      %64 = vector.shape_cast %63 : vector<8xf32> to vector<8x1xf32>
      %65 = vector.broadcast %64 : vector<8x1xf32> to vector<8x4xf32>
      %66 = arith.subf %57, %65 : vector<8x4xf32>
      %67 = math.exp %66 : vector<8x4xf32>
      %cst_38 = arith.constant dense<0.000000e+00> : vector<8xf32>
      %68 = vector.multi_reduction <add>, %67, %cst_38 [1] : vector<8x4xf32> to vector<8xf32>
      %69 = vector.shape_cast %68 : vector<8xf32> to vector<8x1xf32>
      %70 = math.log %69 : vector<8x1xf32>
      %71 = arith.addf %64, %70 : vector<8x1xf32>
      %cst_39 = arith.constant 0.000000e+00 : f32
      %72 = vector.broadcast %cst_39 : f32 to vector<8x4xf32>
      %73 = arith.select %62, %57, %72 : vector<8x4xi1>, vector<8x4xf32>
      %cst_40 = arith.constant dense<0.000000e+00> : vector<8xf32>
      %74 = vector.multi_reduction <add>, %73, %cst_40 [1] : vector<8x4xf32> to vector<8xf32>
      %75 = vector.shape_cast %74 : vector<8xf32> to vector<8x1xf32>
      %cst_41 = arith.constant 0.000000e+00 : f32
      %76 = vector.shape_cast %59 : vector<1x4xf32> to vector<1x4xf32>
      %77 = vector.broadcast %76 : vector<1x4xf32> to vector<8x4xf32>
      %78 = vector.broadcast %cst_41 : f32 to vector<8x4xf32>
      %79 = arith.select %62, %77, %78 : vector<8x4xi1>, vector<8x4xf32>
      %cst_42 = arith.constant dense<0.000000e+00> : vector<8xf32>
      %80 = vector.multi_reduction <add>, %79, %cst_42 [1] : vector<8x4xf32> to vector<8xf32>
      %81 = vector.shape_cast %80 : vector<8xf32> to vector<8x1xf32>
      %82 = arith.subf %71, %75 : vector<8x1xf32>
      %c0_43 = arith.constant 0 : index
      %c0_44 = arith.constant 0 : index
      %83 = vector.load %arg9[%c0_43, %c0_44] : memref<1x1xf32, #tpu.memory_space<vmem>>, vector<1x1xf32>
      %84 = arith.mulf %81, %82 : vector<8x1xf32>
      %85 = vector.shape_cast %84 : vector<8x1xf32> to vector<1x8x1xf32>
      %cst_45 = arith.constant dense<0.000000e+00> : vector<1xf32>
      %86 = vector.multi_reduction <add>, %85, %cst_45 [1, 2] : vector<1x8x1xf32> to vector<1xf32>
      %87 = vector.shape_cast %86 : vector<1xf32> to vector<1x1x1xf32>
      %88 = vector.extract %87[0, 0, 0] : f32 from vector<1x1x1xf32>
      %89 = vector.broadcast %88 : f32 to vector<1x1xf32>
      %90 = arith.addf %83, %89 : vector<1x1xf32>
      %c0_46 = arith.constant 0 : index
      %c0_47 = arith.constant 0 : index
      %91 = vector.load %arg9[%c0_46, %c0_47] : memref<1x1xf32, #tpu.memory_space<vmem>>, vector<1x1xf32>
      tpu.vector_store %arg9[%c0_46, %c0_47], %90 {strides = array<i32>} : memref<1x1xf32, #tpu.memory_space<vmem>>, vector<1x1xf32>,
      %c0_48 = arith.constant 0 : index
      %c0_49 = arith.constant 0 : index
      %92 = vector.load %arg10[%c0_48, %c0_49] : memref<1x1xf32, #tpu.memory_space<vmem>>, vector<1x1xf32>
      %93 = vector.shape_cast %81 : vector<8x1xf32> to vector<1x8x1xf32>
      %cst_50 = arith.constant dense<0.000000e+00> : vector<1xf32>
      %94 = vector.multi_reduction <add>, %93, %cst_50 [1, 2] : vector<1x8x1xf32> to vector<1xf32>
      %95 = vector.shape_cast %94 : vector<1xf32> to vector<1x1x1xf32>
      %96 = vector.extract %95[0, 0, 0] : f32 from vector<1x1x1xf32>
      %97 = vector.broadcast %96 : f32 to vector<1x1xf32>
      %98 = arith.addf %92, %97 : vector<1x1xf32>
      %c0_51 = arith.constant 0 : index
      %c0_52 = arith.constant 0 : index
      %99 = vector.load %arg10[%c0_51, %c0_52] : memref<1x1xf32, #tpu.memory_space<vmem>>, vector<1x1xf32>
      tpu.vector_store %arg10[%c0_51, %c0_52], %98 {strides = array<i32>} : memref<1x1xf32, #tpu.memory_space<vmem>>, vector<1x1xf32>,
    } else {
    }
    %c0 = arith.constant 0 : index
    %c0_6 = arith.constant 0 : index
    %c0_7 = arith.constant 0 : index
    %c0_8 = arith.constant 0 : index
    %11 = vector.load %arg5[%c0, %c0_6, %c0_7, %c0_8] : memref<1x8x3x32xf32, #tpu.memory_space<vmem>>, vector<1x8x3x32xf32>
    %12 = vector.shape_cast %11 : vector<1x8x3x32xf32> to vector<8x3x32xf32>
    %c0_9 = arith.constant 0 : index
    %c0_10 = arith.constant 0 : index
    %c0_11 = arith.constant 0 : index
    %13 = vector.load %arg6[%c0_9, %c0_10, %c0_11] : memref<1x8x32xf32, #tpu.memory_space<vmem>>, vector<1x8x32xf32>
    %14 = vector.shape_cast %13 : vector<1x8x32xf32> to vector<8x32xf32>
    %c0_12 = arith.constant 0 : index
    %c0_13 = arith.constant 0 : index
    %15 = vector.load %arg7[%c0_12, %c0_13] : memref<8x3xf32, #tpu.memory_space<vmem>>, vector<8x3xf32>
    %16 = tpu.iota {dimensions = array<i32: 1>} : vector<8x3xi32>
    %17 = vector.broadcast %arg0 : i32 to vector<8x3xi32>
    %18 = arith.cmpi eq, %16, %17 : vector<8x3xi32>
    %cst = arith.constant 0.000000e+00 : f32
    %19 = vector.broadcast %cst : f32 to vector<8x3xf32>
    %20 = arith.select %18, %15, %19 : vector<8x3xi1>, vector<8x3xf32>
    %cst_14 = arith.constant dense<0.000000e+00> : vector<8xf32>
    %21 = vector.multi_reduction <add>, %20, %cst_14 [1] : vector<8x3xf32> to vector<8xf32>
    %22 = vector.shape_cast %21 : vector<8xf32> to vector<8x1xf32>
    %23 = vector.broadcast %22 : vector<8x1xf32> to vector<8x3xf32>
    %24 = arith.mulf %15, %23 : vector<8x3xf32>
    %25 = vector.shape_cast %14 : vector<8x32xf32> to vector<8x1x32xf32>
    %26 = vector.broadcast %25 : vector<8x1x32xf32> to vector<8x3x32xf32>
    %27 = arith.subf %12, %26 : vector<8x3x32xf32>
    %28 = arith.mulf %27, %27 : vector<8x3x32xf32>
    %cst_15 = arith.constant dense<0.000000e+00> : vector<8x3xf32>
    %29 = vector.multi_reduction <add>, %28, %cst_15 [2] : vector<8x3x32xf32> to vector<8x3xf32>
    %cst_16 = arith.constant 3.200000e+01 : f32
    %30 = vector.broadcast %cst_16 : f32 to vector<8x3xf32>
    %31 = arith.divf %29, %30 : vector<8x3xf32>
    %c0_17 = arith.constant 0 : index
    %c0_18 = arith.constant 0 : index
    %32 = vector.load %arg11[%c0_17, %c0_18] : memref<1x1xf32, #tpu.memory_space<vmem>>, vector<1x1xf32>
    %33 = arith.mulf %31, %24 : vector<8x3xf32>
    %34 = vector.shape_cast %33 : vector<8x3xf32> to vector<1x8x3xf32>
    %cst_19 = arith.constant dense<0.000000e+00> : vector<1xf32>
    %35 = vector.multi_reduction <add>, %34, %cst_19 [1, 2] : vector<1x8x3xf32> to vector<1xf32>
    %36 = vector.shape_cast %35 : vector<1xf32> to vector<1x1x1xf32>
    %37 = vector.extract %36[0, 0, 0] : f32 from vector<1x1x1xf32>
    %38 = vector.broadcast %37 : f32 to vector<1x1xf32>
    %39 = arith.addf %32, %38 : vector<1x1xf32>
    %c0_20 = arith.constant 0 : index
    %c0_21 = arith.constant 0 : index
    %40 = vector.load %arg11[%c0_20, %c0_21] : memref<1x1xf32, #tpu.memory_space<vmem>>, vector<1x1xf32>
    tpu.vector_store %arg11[%c0_20, %c0_21], %39 {strides = array<i32>} : memref<1x1xf32, #tpu.memory_space<vmem>>, vector<1x1xf32>,
    %c0_22 = arith.constant 0 : index
    %c0_23 = arith.constant 0 : index
    %41 = vector.load %arg12[%c0_22, %c0_23] : memref<1x1xf32, #tpu.memory_space<vmem>>, vector<1x1xf32>
    %42 = vector.shape_cast %24 : vector<8x3xf32> to vector<1x8x3xf32>
    %cst_24 = arith.constant dense<0.000000e+00> : vector<1xf32>
    %43 = vector.multi_reduction <add>, %42, %cst_24 [1, 2] : vector<1x8x3xf32> to vector<1xf32>
    %44 = vector.shape_cast %43 : vector<1xf32> to vector<1x1x1xf32>
    %45 = vector.extract %44[0, 0, 0] : f32 from vector<1x1x1xf32>
    %46 = vector.broadcast %45 : f32 to vector<1x1xf32>
    %47 = arith.addf %41, %46 : vector<1x1xf32>
    %c0_25 = arith.constant 0 : index
    %c0_26 = arith.constant 0 : index
    %48 = vector.load %arg12[%c0_25, %c0_26] : memref<1x1xf32, #tpu.memory_space<vmem>>, vector<1x1xf32>
    tpu.vector_store %arg12[%c0_25, %c0_26], %47 {strides = array<i32>} : memref<1x1xf32, #tpu.memory_space<vmem>>, vector<1x1xf32>,
    %c0_i32_27 = arith.constant 0 : i32
    %49 = arith.cmpi eq, %arg1, %c0_i32_27 : i32
    %50 = arith.extui %49 : i1 to i32
    %c0_i32_28 = arith.constant 0 : i32
    %51 = arith.cmpi ne, %50, %c0_i32_28 : i32
    scf.if %51 {
      %c0_31 = arith.constant 0 : index
      %c0_32 = arith.constant 0 : index
      %57 = vector.load %arg12[%c0_31, %c0_32] : memref<1x1xf32, #tpu.memory_space<vmem>>, vector<1x1xf32>
      %cst_33 = arith.constant 0.000000e+00 : f32
      %58 = vector.broadcast %cst_33 : f32 to vector<1x1xf32>
      %59 = arith.cmpf ogt, %57, %58 : vector<1x1xf32>
      %c0_34 = arith.constant 0 : index
      %c0_35 = arith.constant 0 : index
      %60 = vector.load %arg13[%c0_34, %c0_35] : memref<1x1xf32, #tpu.memory_space<vmem>>, vector<1x1xf32>
      %c0_36 = arith.constant 0 : index
      %c0_37 = arith.constant 0 : index
      %61 = vector.load %arg11[%c0_36, %c0_37] : memref<1x1xf32, #tpu.memory_space<vmem>>, vector<1x1xf32>
      %cst_38 = arith.constant 1.000000e+00 : f32
      %62 = vector.broadcast %cst_38 : f32 to vector<1x1xf32>
      %63 = arith.maximumf %57, %62 : vector<1x1xf32>
      %64 = arith.divf %61, %63 : vector<1x1xf32>
      %cst_39 = arith.constant 0.000000e+00 : f32
      %65 = vector.broadcast %cst_39 : f32 to vector<1x1xf32>
      %66 = arith.select %59, %64, %65 : vector<1x1xi1>, vector<1x1xf32>
      %67 = arith.addf %60, %66 : vector<1x1xf32>
      %c0_40 = arith.constant 0 : index
      %c0_41 = arith.constant 0 : index
      %68 = vector.load %arg13[%c0_40, %c0_41] : memref<1x1xf32, #tpu.memory_space<vmem>>, vector<1x1xf32>
      tpu.vector_store %arg13[%c0_40, %c0_41], %67 {strides = array<i32>} : memref<1x1xf32, #tpu.memory_space<vmem>>, vector<1x1xf32>,
      %c0_42 = arith.constant 0 : index
      %c0_43 = arith.constant 0 : index
      %69 = vector.load %arg14[%c0_42, %c0_43] : memref<1x1xf32, #tpu.memory_space<vmem>>, vector<1x1xf32>
      %cst_44 = arith.constant 1.000000e+00 : f32
      %cst_45 = arith.constant 0.000000e+00 : f32
      %70 = vector.broadcast %cst_44 : f32 to vector<1x1xf32>
      %71 = vector.broadcast %cst_45 : f32 to vector<1x1xf32>
      %72 = arith.select %59, %70, %71 : vector<1x1xi1>, vector<1x1xf32>
      %73 = arith.addf %69, %72 : vector<1x1xf32>
      %c0_46 = arith.constant 0 : index
      %c0_47 = arith.constant 0 : index
      %74 = vector.load %arg14[%c0_46, %c0_47] : memref<1x1xf32, #tpu.memory_space<vmem>>, vector<1x1xf32>
      tpu.vector_store %arg14[%c0_46, %c0_47], %73 {strides = array<i32>} : memref<1x1xf32, #tpu.memory_space<vmem>>, vector<1x1xf32>,
    } else {
    }
    %c2_i32 = arith.constant 2 : i32
    %52 = arith.cmpi eq, %arg0, %c2_i32 : i32
    %c0_i32_29 = arith.constant 0 : i32
    %53 = arith.cmpi eq, %arg1, %c0_i32_29 : i32
    %54 = arith.andi %52, %53 : i1
    %55 = arith.extui %54 : i1 to i32
    %c0_i32_30 = arith.constant 0 : i32
    %56 = arith.cmpi ne, %55, %c0_i32_30 : i32
    scf.if %56 {
      %c0_31 = arith.constant 0 : index
      %c0_32 = arith.constant 0 : index
      %57 = vector.load %arg13[%c0_31, %c0_32] : memref<1x1xf32, #tpu.memory_space<vmem>>, vector<1x1xf32>
      %c0_33 = arith.constant 0 : index
      %c0_34 = arith.constant 0 : index
      %58 = vector.load %arg14[%c0_33, %c0_34] : memref<1x1xf32, #tpu.memory_space<vmem>>, vector<1x1xf32>
      %cst_35 = arith.constant 0.000000e+00 : f32
      %59 = vector.broadcast %cst_35 : f32 to vector<1x1xf32>
      %60 = arith.cmpf ogt, %58, %59 : vector<1x1xf32>
      %cst_36 = arith.constant 1.000000e+00 : f32
      %61 = vector.broadcast %cst_36 : f32 to vector<1x1xf32>
      %62 = arith.maximumf %58, %61 : vector<1x1xf32>
      %63 = arith.divf %57, %62 : vector<1x1xf32>
      %64 = arith.select %60, %63, %57 : vector<1x1xi1>, vector<1x1xf32>
      %c0_37 = arith.constant 0 : index
      %c0_38 = arith.constant 0 : index
      %65 = vector.load %arg9[%c0_37, %c0_38] : memref<1x1xf32, #tpu.memory_space<vmem>>, vector<1x1xf32>
      %c0_39 = arith.constant 0 : index
      %c0_40 = arith.constant 0 : index
      %66 = vector.load %arg10[%c0_39, %c0_40] : memref<1x1xf32, #tpu.memory_space<vmem>>, vector<1x1xf32>
      %67 = arith.divf %65, %66 : vector<1x1xf32>
      %cst_41 = arith.constant 0.00999999977 : f32
      %68 = vector.broadcast %cst_41 : f32 to vector<1x1xf32>
      %69 = arith.mulf %68, %64 : vector<1x1xf32>
      %70 = arith.addf %67, %69 : vector<1x1xf32>
      %c0_42 = arith.constant 0 : index
      %c0_43 = arith.constant 0 : index
      %71 = vector.load %arg8[%c0_42, %c0_43] : memref<1x1xf32, #tpu.memory_space<vmem>>, vector<1x1xf32>
      tpu.vector_store %arg8[%c0_42, %c0_43], %70 {strides = array<i32>} : memref<1x1xf32, #tpu.memory_space<vmem>>, vector<1x1xf32>,
    } else {
    }
    return
  }
  func.func @transform_0(%arg0: i32, %arg1: i32) -> (i32, i32) {
    %c0_i32 = arith.constant 0 : i32
    %c0_i32_0 = arith.constant 0 : i32
    return %arg1, %c0_i32 : i32, i32
  }
  func.func @transform_1(%arg0: i32, %arg1: i32) -> (i32, i32) {
    %c0_i32 = arith.constant 0 : i32
    %c0_i32_0 = arith.constant 0 : i32
    return %arg1, %c0_i32 : i32, i32
  }
  func.func @transform_2(%arg0: i32, %arg1: i32) -> (i32, i32) {
    %c0_i32 = arith.constant 0 : i32
    %c0_i32_0 = arith.constant 0 : i32
    %c0_i32_1 = arith.constant 0 : i32
    return %c0_i32, %c0_i32_0 : i32, i32
  }
  func.func @transform_3(%arg0: i32, %arg1: i32) -> (i32, i32, i32, i32) {
    %c0_i32 = arith.constant 0 : i32
    %c0_i32_0 = arith.constant 0 : i32
    %c0_i32_1 = arith.constant 0 : i32
    return %arg0, %arg1, %c0_i32, %c0_i32_0 : i32, i32, i32, i32
  }
  func.func @transform_4(%arg0: i32, %arg1: i32) -> (i32, i32, i32) {
    %c0_i32 = arith.constant 0 : i32
    %c0_i32_0 = arith.constant 0 : i32
    return %arg0, %arg1, %c0_i32 : i32, i32, i32
  }
  func.func @transform_5(%arg0: i32, %arg1: i32) -> (i32, i32) {
    %c0_i32 = arith.constant 0 : i32
    %c0_i32_0 = arith.constant 0 : i32
    return %arg1, %c0_i32 : i32, i32
  }
  func.func @transform_6(%arg0: i32, %arg1: i32) -> (i32, i32) {
    %c0_i32 = arith.constant 0 : i32
    %c0_i32_0 = arith.constant 0 : i32
    %c0_i32_1 = arith.constant 0 : i32
    return %c0_i32, %c0_i32_0 : i32, i32
  }
}

</mosaic_0001>

<llo_original>
// kernel: tpu_custom_call.1
$region0: #{tpu_custom_call.1}
  #allocation0 [shape = 'u32[]', space=smem, size = 0x4, offset = 0x4, fixed_abs, tag = 'smem constant byte address 0x4 - core index']
  #allocation1 [shape = 'u32[144,128]{1,0:T(1,128)}', space=vmem, size = 0x12000, scoped, tag = 'internal scratch']
  #allocation2 [shape = 'f32[1,1]{1,0:T(1,128)}', space=vmem, size = 0x200, scoped, tag = 'scratch operand']
  #allocation3 [shape = 'f32[1,1]{1,0:T(1,128)}', space=vmem, size = 0x200, scoped, tag = 'scratch operand']
  #allocation4 [shape = 'f32[1,1]{1,0:T(1,128)}', space=vmem, size = 0x200, scoped, tag = 'scratch operand']
  #allocation5 [shape = 'f32[1,1]{1,0:T(1,128)}', space=vmem, size = 0x200, scoped, tag = 'scratch operand']
  #allocation6 [shape = 'f32[1,1]{1,0:T(1,128)}', space=vmem, size = 0x200, scoped, tag = 'scratch operand']
  #allocation7 [shape = 'f32[1,1]{1,0:T(1,128)}', space=vmem, size = 0x200, scoped, tag = 'scratch operand']
  %s0 = inlined_call_operand.vmem [shape: f32[8,4], index: 0, kind: input, shape index: {}]
  %s1 = inlined_call_operand.vmem [shape: s32[8,1], index: 1, kind: input, shape index: {}]
  %s2 = inlined_call_operand.vmem [shape: f32[1,4], index: 2, kind: input, shape index: {}]
  %s3 = inlined_call_operand.vmem [shape: f32[3,8,3,32], index: 3, kind: input, shape index: {}]
  %s4 = inlined_call_operand.vmem [shape: f32[3,8,32], index: 4, kind: input, shape index: {}]
  %s5 = inlined_call_operand.vmem [shape: f32[8,3], index: 5, kind: input, shape index: {}]
  %s6 = inlined_call_operand.hbm [shape: f32[1,1], index: 6, kind: output, shape index: {}]
  %s7 = sld [smem:[#allocation0]]
  $region77: #{tpu_custom_call.1} parent=0
    _
  %s9 = ssub.s32 1, %s7
  %s10 = scalar_select 0, %s9, %s7
  $region1: #{tpu_custom_call.1} parent=0
    #allocation8 [shape = 'u8[512]{0}', space=vmem, size = 0x400, scoped, tag = 'output window, operand 0, single buffered']
    #allocation9 [shape = 's32[2]{0}', space=sflag, size = 0x8, scoped, tag = 'scoped memory for tpu_custom_call.1']
    %11 = vsyncpa [#allocation9], 0
    loop: start=0, step=1, limit=5
    $region2: #{tpu_custom_call.1} parent=1 // loop_pre_header
      _
    $region3: #{tpu_custom_call.1} parent=1 // loop_header
      %s13 = sphi 0, %s17
      %p14 = scmp.ge.s32.totalorder %s13, 5
      %s20 = sphi 0, %s32
      %s21 = sphi 0, %s28
      %s22 = sphi 0, %s20
      %s23 = sphi 0, %s21
      %s24 = sphi 0, %s22
      %s25 = sphi 0, %s23
      %s35 = sphi 0, %s37
      %s38 = sphi 0, %s35
      %s39 = sphi 0, %s38
      %s55 = sphi 0, %s39
      %s61 = sphi 0, %s63
      %s64 = sphi 0, %s61
      %s65 = sphi 0, %s64
      %s81 = sphi 0, %s65
      %s85 = sphi 0, %s85
      %s87 = sphi 0, %s85
      %s88 = sphi 0, %s87
      %s102 = sphi 0, %s88
      %s110 = sphi 0, %s112
      %s113 = sphi 0, %s110
      %s114 = sphi 0, %s113
      %s130 = sphi 0, %s114
      %s138 = sphi 0, %s140
      %s141 = sphi 0, %s138
      %s142 = sphi 0, %s141
      %s158 = sphi 0, %s142
      %s164 = sphi 0, %s166
      %s167 = sphi 0, %s164
      %s168 = sphi 0, %s167
      %s184 = sphi 0, %s168
      %s188 = sphi 0, %s188
      %s190 = sphi 0, %s188
      %s191 = sphi 0, %s190
      %s205 = sphi 0, %s191
    $region4: #{tpu_custom_call.1} parent=1 // loop_header_branch
      %16 = sbr.rel (%p14) target = $region8
    $region5: #{tpu_custom_call.1} parent=1 // loop_body
      %s18 = ssub.s32 %s13, 1
      %s19 = ssub.s32 %s13, 2
      %s26 = sadd.s32 1, %s21
      %p27 = scmp.ge.s32.totalorder %s26, 1
      %s28 = scalar_select %p27, 0, %s26
      %s29 = sadd.s32 1, %s20
      %s30 = scalar_select %p27, %s29, %s20
      %p31 = scmp.ge.s32.totalorder %s30, 3
      %s32 = scalar_select %p31, 0, %s30
      %s33 = ssub.s32 %s21, %s28
      %p34 = scmp.eq.s32.totalorder %s33, 0
      %s36 = sadd.s32 %s35, 1
      %s37 = scalar_select %p34, %s35, %s36
      %p40 = pneg %p34
      %p41 = scmp.eq.s32.totalorder %s13, 2
      %p42 = por %p40, %p41
      %p43 = scmp.ne.s32.totalorder %s35, %s38
      %p44 = scmp.eq.s32.totalorder %s13, 0
      %p45 = por %p43, %p44
      %p46 = scmp.ne.s32.totalorder %s35, %s38
      %p47 = scmp.eq.s32.totalorder %s18, 2
      %p48 = por %p46, %p47
      %p49 = scmp.ne.s32.totalorder %s38, %s39
      %p50 = scmp.eq.s32.totalorder %s18, 0
      %p51 = por %p49, %p50
      %p52 = scmp.ne.s32.totalorder %s38, %s39
      %p53 = scmp.eq.s32.totalorder %s19, 2
      %p54 = por %p52, %p53
      %p56 = scmp.ne.s32.totalorder %s39, %s55
      %p57 = scmp.eq.s32.totalorder %s19, 0
      %p58 = por %p56, %p57
      %s59 = ssub.s32 %s21, %s28
      %p60 = scmp.eq.s32.totalorder %s59, 0
      %s62 = sadd.s32 %s61, 1
      %s63 = scalar_select %p60, %s61, %s62
      %p66 = pneg %p60
      %p67 = scmp.eq.s32.totalorder %s13, 2
      %p68 = por %p66, %p67
      %p69 = scmp.ne.s32.totalorder %s61, %s64
      %p70 = scmp.eq.s32.totalorder %s13, 0
      %p71 = por %p69, %p70
      %p72 = scmp.ne.s32.totalorder %s61, %s64
      %p73 = scmp.eq.s32.totalorder %s18, 2
      %p74 = por %p72, %p73
      %p75 = scmp.ne.s32.totalorder %s64, %s65
      %p76 = scmp.eq.s32.totalorder %s18, 0
      %p77 = por %p75, %p76
      %p78 = scmp.ne.s32.totalorder %s64, %s65
      %p79 = scmp.eq.s32.totalorder %s19, 2
      %p80 = por %p78, %p79
      %p82 = scmp.ne.s32.totalorder %s65, %s81
      %p83 = scmp.eq.s32.totalorder %s19, 0
      %p84 = por %p82, %p83
      %s86 = sadd.s32 %s85, 1
      %p89 = scmp.eq.s32.totalorder %s13, 2
      %p90 = scmp.ne.s32.totalorder %s85, %s87
      %p91 = scmp.eq.s32.totalorder %s13, 0
      %p92 = por %p90, %p91
      %p93 = scmp.ne.s32.totalorder %s85, %s87
      %p94 = scmp.eq.s32.totalorder %s18, 2
      %p95 = por %p93, %p94
      %p96 = scmp.ne.s32.totalorder %s87, %s88
      %p97 = scmp.eq.s32.totalorder %s18, 0
      %p98 = por %p96, %p97
      %p99 = scmp.ne.s32.totalorder %s87, %s88
      %p100 = scmp.eq.s32.totalorder %s19, 2
      %p101 = por %p99, %p100
      %p103 = scmp.ne.s32.totalorder %s88, %s102
      %p104 = scmp.eq.s32.totalorder %s19, 0
      %p105 = por %p103, %p104
      %s106 = ssub.s32 %s20, %s32
      %s107 = ssub.s32 %s21, %s28
      %s108 = sor.u32 %s106, %s107
      %p109 = scmp.eq.s32.totalorder %s108, 0
      %s111 = sadd.s32 %s110, 1
      %s112 = scalar_select %p109, %s110, %s111
      %p115 = pneg %p109
      %p116 = scmp.eq.s32.totalorder %s13, 2
      %p117 = por %p115, %p116
      %p118 = scmp.ne.s32.totalorder %s110, %s113
      %p119 = scmp.eq.s32.totalorder %s13, 0
      %p120 = por %p118, %p119
      %p121 = scmp.ne.s32.totalorder %s110, %s113
      %p122 = scmp.eq.s32.totalorder %s18, 2
      %p123 = por %p121, %p122
      %p124 = scmp.ne.s32.totalorder %s113, %s114
      %p125 = scmp.eq.s32.totalorder %s18, 0
      %p126 = por %p124, %p125
      %p127 = scmp.ne.s32.totalorder %s113, %s114
      %p128 = scmp.eq.s32.totalorder %s19, 2
      %p129 = por %p127, %p128
      %p131 = scmp.ne.s32.totalorder %s114, %s130
      %p132 = scmp.eq.s32.totalorder %s19, 0
      %p133 = por %p131, %p132
      %s134 = ssub.s32 %s20, %s32
      %s135 = ssub.s32 %s21, %s28
      %s136 = sor.u32 %s134, %s135
      %p137 = scmp.eq.s32.totalorder %s136, 0
      %s139 = sadd.s32 %s138, 1
      %s140 = scalar_select %p137, %s138, %s139
      %p143 = pneg %p137
      %p144 = scmp.eq.s32.totalorder %s13, 2
      %p145 = por %p143, %p144
      %p146 = scmp.ne.s32.totalorder %s138, %s141
      %p147 = scmp.eq.s32.totalorder %s13, 0
      %p148 = por %p146, %p147
      %p149 = scmp.ne.s32.totalorder %s138, %s141
      %p150 = scmp.eq.s32.totalorder %s18, 2
      %p151 = por %p149, %p150
      %p152 = scmp.ne.s32.totalorder %s141, %s142
      %p153 = scmp.eq.s32.totalorder %s18, 0
      %p154 = por %p152, %p153
      %p155 = scmp.ne.s32.totalorder %s141, %s142
      %p156 = scmp.eq.s32.totalorder %s19, 2
      %p157 = por %p155, %p156
      %p159 = scmp.ne.s32.totalorder %s142, %s158
      %p160 = scmp.eq.s32.totalorder %s19, 0
      %p161 = por %p159, %p160
      %s162 = ssub.s32 %s21, %s28
      %p163 = scmp.eq.s32.totalorder %s162, 0
      %s165 = sadd.s32 %s164, 1
      %s166 = scalar_select %p163, %s164, %s165
      %p169 = pneg %p163
      %p170 = scmp.eq.s32.totalorder %s13, 2
      %p171 = por %p169, %p170
      %p172 = scmp.ne.s32.totalorder %s164, %s167
      %p173 = scmp.eq.s32.totalorder %s13, 0
      %p174 = por %p172, %p173
      %p175 = scmp.ne.s32.totalorder %s164, %s167
      %p176 = scmp.eq.s32.totalorder %s18, 2
      %p177 = por %p175, %p176
      %p178 = scmp.ne.s32.totalorder %s167, %s168
      %p179 = scmp.eq.s32.totalorder %s18, 0
      %p180 = por %p178, %p179
      %p181 = scmp.ne.s32.totalorder %s167, %s168
      %p182 = scmp.eq.s32.totalorder %s19, 2
      %p183 = por %p181, %p182
      %p185 = scmp.ne.s32.totalorder %s168, %s184
      %p186 = scmp.eq.s32.totalorder %s19, 0
      %p187 = por %p185, %p186
      %s189 = sadd.s32 %s188, 1
      %p192 = scmp.eq.s32.totalorder %s13, 2
      %p193 = scmp.ne.s32.totalorder %s188, %s190
      %p194 = scmp.eq.s32.totalorder %s13, 0
      %p195 = por %p193, %p194
      %p196 = scmp.ne.s32.totalorder %s188, %s190
      %p197 = scmp.eq.s32.totalorder %s18, 2
      %p198 = por %p196, %p197
      %p199 = scmp.ne.s32.totalorder %s190, %s191
      %p200 = scmp.eq.s32.totalorder %s18, 0
      %p201 = por %p199, %p200
      %p202 = scmp.ne.s32.totalorder %s190, %s191
      %p203 = scmp.eq.s32.totalorder %s19, 2
      %p204 = por %p202, %p203
      %p206 = scmp.ne.s32.totalorder %s191, %s205
      %p207 = scmp.eq.s32.totalorder %s19, 0
      %p208 = por %p206, %p207
      %p209 = scmp.le.s32.totalorder 1, %s13
      %p210 = scmp.lt.s32.totalorder %s13, 4
      %p211 = pnand %p209, %p210
      %p212 = pneg %p211
      // Predicated region
      $region9: #{tpu_custom_call.1} parent=5 // pred_check
        _
      $region10: #{tpu_custom_call.1} parent=5 // pred_check_branch
        %214 = sbr.rel (%p211) target = $region12
      $region11: #{tpu_custom_call.1} parent=5 // pred_region
        %s215 = ssub.s32 %s13, 1
        // Predicated region
        $region13: #{tpu_custom_call.1} parent=11 // pred_check
          %p216 = pneg %p51
        $region14: #{tpu_custom_call.1} parent=11 // pred_check_branch
          %218 = sbr.rel (%p216) target = $region16
        $region15: #{tpu_custom_call.1} parent=11 // pred_region
          %p219 = scmp.lt.s32.totalorder %s23, 0
          %s220 = scalar_select %p219, %s23, 0
          %s221 = smul.addr %s220, 8
          %s222 = scalar_lea.vmem %s0, %s221
        $region16: #{tpu_custom_call.1} parent=11 // pred_fallthru
          _
        // Predicated region
        $region17: #{tpu_custom_call.1} parent=11 // pred_check
          %p223 = pneg %p77
        $region18: #{tpu_custom_call.1} parent=11 // pred_check_branch
          %225 = sbr.rel (%p223) target = $region20
        $region19: #{tpu_custom_call.1} parent=11 // pred_region
          %p226 = scmp.lt.s32.totalorder %s23, 0
          %s227 = scalar_select %p226, %s23, 0
          %s228 = smul.addr %s227, 8
          %s229 = scalar_lea.vmem %s1, %s228
        $region20: #{tpu_custom_call.1} parent=11 // pred_fallthru
          _
        // Predicated region
        $region21: #{tpu_custom_call.1} parent=11 // pred_check
          %p230 = pneg %p98
        $region22: #{tpu_custom_call.1} parent=11 // pred_check_branch
          %232 = sbr.rel (%p230) target = $region24
        $region23: #{tpu_custom_call.1} parent=11 // pred_region
          _
        $region24: #{tpu_custom_call.1} parent=11 // pred_fallthru
          _
        // Predicated region
        $region25: #{tpu_custom_call.1} parent=11 // pred_check
          %p233 = pneg %p180
        $region26: #{tpu_custom_call.1} parent=11 // pred_check_branch
          %235 = sbr.rel (%p233) target = $region28
        $region27: #{tpu_custom_call.1} parent=11 // pred_region
          %p236 = scmp.lt.s32.totalorder %s23, 0
          %s237 = scalar_select %p236, %s23, 0
          %s238 = smul.addr %s237, 8
          %s239 = scalar_lea.vmem %s5, %s238
        $region28: #{tpu_custom_call.1} parent=11 // pred_fallthru
          _
      $region12: #{tpu_custom_call.1} parent=5 // pred_fallthru
        _
      %p240 = scmp.lt.s32.totalorder %s13, 3
      // Predicated region
      $region29: #{tpu_custom_call.1} parent=5 // pred_check
        %p241 = pneg %p240
      $region30: #{tpu_custom_call.1} parent=5 // pred_check_branch
        %243 = sbr.rel (%p241) target = $region32
      $region31: #{tpu_custom_call.1} parent=5 // pred_region
        // Predicated region
        $region33: #{tpu_custom_call.1} parent=31 // pred_check
          %p244 = pneg %p120
        $region34: #{tpu_custom_call.1} parent=31 // pred_check_branch
          %246 = sbr.rel (%p244) target = $region36
        $region35: #{tpu_custom_call.1} parent=31 // pred_region
          %s247 = smul.u32 8, %s21
          %p248 = scmp.lt.s32.totalorder %s20, 2
          %s249 = scalar_select %p248, %s20, 2
          %p250 = scmp.lt.s32.totalorder %s247, 7
          %s251 = scalar_select %p250, %s247, 7
          %s252 = smul.addr %s249, 8
          %s253 = sadd.s32 %s251, %s252
          %s254 = smul.addr %s253, 4
          %s255 = scalar_lea.vmem %s3, %s254
          %s256 = smul.u32 8, %s21
        $region36: #{tpu_custom_call.1} parent=31 // pred_fallthru
          _
        // Predicated region
        $region37: #{tpu_custom_call.1} parent=31 // pred_check
          %p257 = pneg %p148
        $region38: #{tpu_custom_call.1} parent=31 // pred_check_branch
          %259 = sbr.rel (%p257) target = $region40
        $region39: #{tpu_custom_call.1} parent=31 // pred_region
          %p260 = scmp.lt.s32.totalorder %s20, 2
          %s261 = scalar_select %p260, %s20, 2
          %p262 = scmp.lt.s32.totalorder %s21, 0
          %s263 = scalar_select %p262, %s21, 0
          %s264 = sadd.s32 %s263, %s261
          %s265 = smul.addr %s264, 8
          %s266 = scalar_lea.vmem %s4, %s265
        $region40: #{tpu_custom_call.1} parent=31 // pred_fallthru
          _
      $region32: #{tpu_custom_call.1} parent=5 // pred_fallthru
        _
      %p267 = scmp.le.s32.totalorder 1, %s13
      %p268 = scmp.lt.s32.totalorder %s13, 4
      %p269 = pnand %p267, %p268
      %p270 = pneg %p269
      // Predicated region
      $region41: #{tpu_custom_call.1} parent=5 // pred_check
        _
      $region42: #{tpu_custom_call.1} parent=5 // pred_check_branch
        %272 = sbr.rel (%p269) target = $region44
      $region43: #{tpu_custom_call.1} parent=5 // pred_region
        %s273 = ssub.s32 %s13, 1
        %p274 = scmp.lt.s32.totalorder %s23, 0
        %s275 = scalar_select %p274, %s23, 0
        %s276 = smul.addr %s275, 8
        %s277 = scalar_lea.vmem %s0, %s276
        %p278 = pneg %p51
        %p279 = pneg %p48
        %p280 = scmp.lt.s32.totalorder %s23, 0
        %s281 = scalar_select %p280, %s23, 0
        %s282 = smul.addr %s281, 8
        %s283 = scalar_lea.vmem %s1, %s282
        %p284 = pneg %p77
        %p285 = pneg %p74
        %p286 = pneg %p98
        %p287 = pneg %p95
        %s288 = smul.u32 8, %s23
        %p289 = scmp.lt.s32.totalorder %s22, 2
        %s290 = scalar_select %p289, %s22, 2
        %p291 = scmp.lt.s32.totalorder %s288, 7
        %s292 = scalar_select %p291, %s288, 7
        %s293 = smul.addr %s290, 8
        %s294 = sadd.s32 %s292, %s293
        %s295 = smul.addr %s294, 4
        %s296 = scalar_lea.vmem %s3, %s295
        %p297 = pneg %p126
        %p298 = pneg %p123
        %p299 = scmp.lt.s32.totalorder %s22, 2
        %s300 = scalar_select %p299, %s22, 2
        %p301 = scmp.lt.s32.totalorder %s23, 0
        %s302 = scalar_select %p301, %s23, 0
        %s303 = sadd.s32 %s302, %s300
        %s304 = smul.addr %s303, 8
        %s305 = scalar_lea.vmem %s4, %s304
        %p306 = pneg %p154
        %p307 = pneg %p151
        %p308 = scmp.lt.s32.totalorder %s23, 0
        %s309 = scalar_select %p308, %s23, 0
        %s310 = smul.addr %s309, 8
        %s311 = scalar_lea.vmem %s5, %s310
        %p312 = pneg %p180
        %p313 = pneg %p177
        %p314 = pneg %p201
        %p315 = pneg %p198
        %p316 = scmp.lt.s32.totalorder %s23, 0
        %s317 = scalar_select %p316, %s23, 0
        %s318 = smul.addr %s317, 8
        %s319 = scalar_lea.vmem %s0, %s318
        %p320 = scmp.lt.s32.totalorder %s23, 0
        %s321 = scalar_select %p320, %s23, 0
        %s322 = smul.addr %s321, 8
        %s323 = scalar_lea.vmem %s1, %s322
        %s324 = smul.u32 8, %s23
        %p325 = scmp.lt.s32.totalorder %s22, 2
        %s326 = scalar_select %p325, %s22, 2
        %p327 = scmp.lt.s32.totalorder %s324, 7
        %s328 = scalar_select %p327, %s324, 7
        %s329 = smul.addr %s326, 8
        %s330 = sadd.s32 %s328, %s329
        %s331 = smul.addr %s330, 4
        %s332 = scalar_lea.vmem %s3, %s331
        %s333 = smul.u32 8, %s23
        %p334 = scmp.lt.s32.totalorder %s22, 2
        %s335 = scalar_select %p334, %s22, 2
        %p336 = scmp.lt.s32.totalorder %s23, 0
        %s337 = scalar_select %p336, %s23, 0
        %s338 = sadd.s32 %s337, %s335
        %s339 = smul.addr %s338, 8
        %s340 = scalar_lea.vmem %s4, %s339
        %p341 = scmp.lt.s32.totalorder %s23, 0
        %s342 = scalar_select %p341, %s23, 0
        %s343 = smul.addr %s342, 8
        %s344 = scalar_lea.vmem %s5, %s343
        %p345 = scmp.eq.s32.totalorder %s22, 0
        %p346 = scmp.eq.s32.totalorder %s23, 0
        %p347 = pnand %p345, %p346
        %p348 = pneg %p347
        // Predicated region
        $region45: #{tpu_custom_call.1} parent=43 // pred_check
          _
        $region46: #{tpu_custom_call.1} parent=43 // pred_check_branch
          %350 = sbr.rel (%p347) target = $region48
        $region47: #{tpu_custom_call.1} parent=43 // pred_region
          %vm351 = vcmask 0
          %352 = vst.msk [vmem:[#allocation2] sm:$0x1] %vm351, 0.0
          %353 = vst.msk [vmem:[#allocation3] sm:$0x1] %vm351, 0.0
          %354 = vst.msk [vmem:[#allocation6] sm:$0x1] %vm351, 0.0
          %355 = vst.msk [vmem:[#allocation7] sm:$0x1] %vm351, 0.0
        $region48: #{tpu_custom_call.1} parent=43 // pred_fallthru
          _
        // Predicated region
        $region49: #{tpu_custom_call.1} parent=43 // pred_check
          %p356 = pneg %p346
        $region50: #{tpu_custom_call.1} parent=43 // pred_check_branch
          %358 = sbr.rel (%p356) target = $region52
        $region51: #{tpu_custom_call.1} parent=43 // pred_region
          %vm359 = vcmask 0
          %360 = vst.msk [vmem:[#allocation4] sm:$0x1] %vm359, 0.0
          %361 = vst.msk [vmem:[#allocation5] sm:$0x1] %vm359, 0.0
        $region52: #{tpu_custom_call.1} parent=43 // pred_fallthru
          _
        // Predicated region
        $region53: #{tpu_custom_call.1} parent=43 // pred_check
          %p362 = pneg %p345
        $region54: #{tpu_custom_call.1} parent=43 // pred_check_branch
          %364 = sbr.rel (%p362) target = $region56
        $region55: #{tpu_custom_call.1} parent=43 // pred_region
          %v365 = vld [vmem:[%s319] sm:$0xff]
          %v366 = vld [vmem:[%s323] sm:$0xff]
          %v367 = vld [vmem:[%s2] sm:$0x1]
          %v368 = vlaneseq
          %v369 = vand.u32 %v368, 127
          %370 = vset.pattern.permute.xlu0 0
          %371 = vperm.xlu0 %370, %v366
          %v372 = vpop.permute.xlu0 %371
          %vm373 = vcmp.eq.s32.totalorder %v369, %v372
          %vm374 = vcmask 31744
          %v375 = vsel %vm374, %v365, -inf
          %376 = vmax.xlane.f32.xlu0 %v375
          %v377 = vpop.xlane.xlu0 %376
          %v378 = vsub.f32 %v365, %v377
          %v379 = vmul.f32 %v378, 1.442695
          %v380 = vpow.pop %v379
          %v381 = vsel %vm374, %v380, 0.0
          %382 = vadd.xlane.f32.xlu0 %v381
          %v383 = vpop.xlane.xlu0 %382
          %v384 = vlog2.pop %v383
          %v385 = vmul.f32 %v384, 0.6931472
          %v386 = vadd.f32 %v377, %v385
          %v387 = vsel %vm373, %v365, 0.0
          %v388 = vsel %vm374, %v387, 0.0
          %389 = vadd.xlane.f32.xlu0 %v388
          %v390 = vpop.xlane.xlu0 %389
          %v392 = vlaneseq
          %v393 = vshrl.u32 %v392, 7
          %v394 = vsub.s32 0, %v393
          %v395 = vrot.slane %v367, %v394
          %v397 = vsel %vm373, %v395, 0.0
          %v398 = vsel %vm374, %v397, 0.0
          %399 = vadd.xlane.f32.xlu0 %v398
          %v400 = vpop.xlane.xlu0 %399
          %v401 = vsub.f32 %v386, %v390
          %v402 = vld [vmem:[#allocation2] sm:$0x1]
          %v403 = vmul.f32 %v400, %v401
          %vm404 = vcmask 7168
          %v405 = vsel %vm404, %v403, 0.0
          %406 = vadd.xlane.f32.xlu0 %v405
          %v407 = vpop.xlane.xlu0 %406
          %v408 = vrot.slane %v407, 4
          %v409 = vadd.f32 %v407, %v408
          %v410 = vrot.slane %v409, 2
          %v411 = vadd.f32 %v409, %v410
          %v412 = vrot.slane %v411, 1
          %v413 = vadd.f32 %v411, %v412
          %s414 = vtos %v413
          %v415 = vstv %s414
          %v416 = vadd.f32 %v402, %v415
          %vm417 = vcmask 0
          %418 = vst.msk [vmem:[#allocation2] sm:$0x1] %vm417, %v416
          %v419 = vld [vmem:[#allocation3] sm:$0x1]
          %v420 = vsel %vm404, %v400, 0.0
          %421 = vadd.xlane.f32.xlu0 %v420
          %v422 = vpop.xlane.xlu0 %421
          %v423 = vrot.slane %v422, 4
          %v424 = vadd.f32 %v422, %v423
          %v425 = vrot.slane %v424, 2
          %v426 = vadd.f32 %v424, %v425
          %v427 = vrot.slane %v426, 1
          %v428 = vadd.f32 %v426, %v427
          %s429 = vtos %v428
          %v430 = vstv %s429
          %v431 = vadd.f32 %v419, %v430
          %432 = vst.msk [vmem:[#allocation3] sm:$0x1] %vm417, %v431
        $region56: #{tpu_custom_call.1} parent=43 // pred_fallthru
          _
        %v433 = vld [vmem:[%s332] sm:$0x7]
        %v434 = vld [vmem:[%s332 + $0x4] sm:$0x7]
        %v435 = vld [vmem:[%s332 + $0x8] sm:$0x7]
        %v436 = vld [vmem:[%s332 + $0xc] sm:$0x7]
        %v437 = vld [vmem:[%s332 + $0x10] sm:$0x7]
        %v438 = vld [vmem:[%s332 + $0x14] sm:$0x7]
        %v439 = vld [vmem:[%s332 + $0x18] sm:$0x7]
        %v440 = vld [vmem:[%s332 + $0x1c] sm:$0x7]
        %v441 = vld [vmem:[%s340] sm:$0xff]
        %v442 = vld [vmem:[%s344] sm:$0xff]
        %v443 = vlaneseq
        %v444 = vand.u32 %v443, 127
        %v445 = vstv %s22
        %vm446 = vcmp.eq.s32.totalorder %v444, %v445
        %v447 = vsel %vm446, %v442, 0.0
        %vm448 = vcmask 23552
        %v449 = vsel %vm448, %v447, 0.0
        %450 = vadd.xlane.f32.xlu0 %v449
        %v451 = vpop.xlane.xlu0 %450
        %v452 = vmul.f32 %v442, %v451
        %v454 = vcombine.high %v441, %v441
        %v456 = vunpack.c.l.s4 1966171168
        %v457 = vunpack.c.0.s8 %v456
        %v458 = vlaneseq
        %v459 = vshrl.u32 %v458, 7
        %v460 = vsub.s32 %v457, %v459
        %v461 = vrot.slane %v441, %v460
        %v463 = vunpack.c.l.s4 1966171168
        %v464 = vunpack.c.0.s8 %v463
        %v465 = vlaneseq
        %v466 = vshrl.u32 %v465, 7
        %v467 = vsub.s32 %v464, %v466
        %v468 = vrot.slane %v454, %v467
        %v469 = vcombine.high %v461, %v461
        %v470 = vcombine.high %v468, %v468
        %v472 = vunpack.c.l.s4 1966171168
        %v473 = vunpack.c.0.s8 %v472
        %v474 = vlaneseq
        %v475 = vshrl.u32 %v474, 7
        %v476 = vsub.s32 %v473, %v475
        %v477 = vrot.slane %v461, %v476
        %v479 = vunpack.c.l.s4 1966171168
        %v480 = vunpack.c.0.s8 %v479
        %v481 = vlaneseq
        %v482 = vshrl.u32 %v481, 7
        %v483 = vsub.s32 %v480, %v482
        %v484 = vrot.slane %v468, %v483
        %v486 = vunpack.c.l.s4 1966171168
        %v487 = vunpack.c.0.s8 %v486
        %v488 = vlaneseq
        %v489 = vshrl.u32 %v488, 7
        %v490 = vsub.s32 %v487, %v489
        %v491 = vrot.slane %v469, %v490
        %v493 = vunpack.c.l.s4 1966171168
        %v494 = vunpack.c.0.s8 %v493
        %v495 = vlaneseq
        %v496 = vshrl.u32 %v495, 7
        %v497 = vsub.s32 %v494, %v496
        %v498 = vrot.slane %v470, %v497
        %v499 = vcombine.high %v477, %v477
        %v500 = vcombine.high %v484, %v484
        %v501 = vcombine.high %v491, %v491
        %v502 = vcombine.high %v498, %v498
        %v503 = vlaneseq
        %v504 = vshrl.u32 %v503, 7
        %v505 = vsub.s32 0, %v504
        %v506 = vrot.slane %v477, %v505
        %v507 = vlaneseq
        %v508 = vshrl.u32 %v507, 7
        %v509 = vsub.s32 0, %v508
        %v510 = vrot.slane %v491, %v509
        %v511 = vlaneseq
        %v512 = vshrl.u32 %v511, 7
        %v513 = vsub.s32 0, %v512
        %v514 = vrot.slane %v499, %v513
        %v515 = vlaneseq
        %v516 = vshrl.u32 %v515, 7
        %v517 = vsub.s32 0, %v516
        %v518 = vrot.slane %v501, %v517
        %v519 = vlaneseq
        %v520 = vshrl.u32 %v519, 7
        %v521 = vsub.s32 0, %v520
        %v522 = vrot.slane %v484, %v521
        %v523 = vlaneseq
        %v524 = vshrl.u32 %v523, 7
        %v525 = vsub.s32 0, %v524
        %v526 = vrot.slane %v498, %v525
        %v527 = vlaneseq
        %v528 = vshrl.u32 %v527, 7
        %v529 = vsub.s32 0, %v528
        %v530 = vrot.slane %v500, %v529
        %v531 = vlaneseq
        %v532 = vshrl.u32 %v531, 7
        %v533 = vsub.s32 0, %v532
        %v534 = vrot.slane %v502, %v533
        %v543 = vsub.f32 %v433, %v506
        %v544 = vsub.f32 %v434, %v510
        %v545 = vsub.f32 %v435, %v514
        %v546 = vsub.f32 %v436, %v518
        %v547 = vsub.f32 %v437, %v522
        %v548 = vsub.f32 %v438, %v526
        %v549 = vsub.f32 %v439, %v530
        %v550 = vsub.f32 %v440, %v534
        %v551 = vmul.f32 %v543, %v543
        %v552 = vmul.f32 %v544, %v544
        %v553 = vmul.f32 %v545, %v545
        %v554 = vmul.f32 %v546, %v546
        %v555 = vmul.f32 %v547, %v547
        %v556 = vmul.f32 %v548, %v548
        %v557 = vmul.f32 %v549, %v549
        %v558 = vmul.f32 %v550, %v550
        %vm559 = vcmask 256000
        %v560 = vsel %vm559, %v551, 0.0
        %561 = vadd.xlane.f32.xlu0 %v560
        %v562 = vpop.xlane.xlu0 %561
        %v563 = vsel %vm559, %v552, 0.0
        %564 = vadd.xlane.f32.xlu0 %v563
        %v565 = vpop.xlane.xlu0 %564
        %v566 = vsel %vm559, %v553, 0.0
        %567 = vadd.xlane.f32.xlu0 %v566
        %v568 = vpop.xlane.xlu0 %567
        %v569 = vsel %vm559, %v554, 0.0
        %570 = vadd.xlane.f32.xlu0 %v569
        %v571 = vpop.xlane.xlu0 %570
        %v572 = vsel %vm559, %v555, 0.0
        %573 = vadd.xlane.f32.xlu0 %v572
        %v574 = vpop.xlane.xlu0 %573
        %v575 = vsel %vm559, %v556, 0.0
        %576 = vadd.xlane.f32.xlu0 %v575
        %v577 = vpop.xlane.xlu0 %576
        %v578 = vsel %vm559, %v557, 0.0
        %579 = vadd.xlane.f32.xlu0 %v578
        %v580 = vpop.xlane.xlu0 %579
        %v581 = vsel %vm559, %v558, 0.0
        %582 = vadd.xlane.f32.xlu0 %v581
        %v583 = vpop.xlane.xlu0 %582
        %v584 = vrcp.pop 32.0
        %v585 = vmul.f32 %v562, %v584
        %v586 = vmul.f32 %v565, %v584
        %v587 = vmul.f32 %v568, %v584
        %v588 = vmul.f32 %v571, %v584
        %v589 = vmul.f32 %v574, %v584
        %v590 = vmul.f32 %v577, %v584
        %v591 = vmul.f32 %v580, %v584
        %v592 = vmul.f32 %v583, %v584
        %v593 = vld [vmem:[#allocation4] sm:$0x1]
        %v595 = vlaneseq
        %v596 = vshrl.u32 %v595, 7
        %v597 = vsub.s32 0, %v596
        %v598 = vrot.slane %v452, %v597
        %600 = vbcast.lane.b32.xlu0 %v598, 256
        %v601 = vpop.permute.xlu0 %600
        %v602 = vlaneseq
        %v603 = vshrl.u32 %v602, 7
        %v604 = vsub.s32 1, %v603
        %v605 = vrot.slane %v452, %v604
        %607 = vbcast.lane.b32.xlu0 %v605, 256
        %v608 = vpop.permute.xlu0 %607
        %v609 = vlaneseq
        %v610 = vshrl.u32 %v609, 7
        %v611 = vsub.s32 2, %v610
        %v612 = vrot.slane %v452, %v611
        %614 = vbcast.lane.b32.xlu0 %v612, 256
        %v615 = vpop.permute.xlu0 %614
        %v616 = vlaneseq
        %v617 = vshrl.u32 %v616, 7
        %v618 = vsub.s32 3, %v617
        %v619 = vrot.slane %v452, %v618
        %621 = vbcast.lane.b32.xlu0 %v619, 256
        %v622 = vpop.permute.xlu0 %621
        %v623 = vlaneseq
        %v624 = vshrl.u32 %v623, 7
        %v625 = vsub.s32 4, %v624
        %v626 = vrot.slane %v452, %v625
        %628 = vbcast.lane.b32.xlu0 %v626, 256
        %v629 = vpop.permute.xlu0 %628
        %v630 = vlaneseq
        %v631 = vshrl.u32 %v630, 7
        %v632 = vsub.s32 5, %v631
        %v633 = vrot.slane %v452, %v632
        %635 = vbcast.lane.b32.xlu0 %v633, 256
        %v636 = vpop.permute.xlu0 %635
        %v637 = vlaneseq
        %v638 = vshrl.u32 %v637, 7
        %v639 = vsub.s32 6, %v638
        %v640 = vrot.slane %v452, %v639
        %642 = vbcast.lane.b32.xlu0 %v640, 256
        %v643 = vpop.permute.xlu0 %642
        %v644 = vlaneseq
        %v645 = vshrl.u32 %v644, 7
        %v646 = vsub.s32 7, %v645
        %v647 = vrot.slane %v452, %v646
        %649 = vbcast.lane.b32.xlu0 %v647, 256
        %v650 = vpop.permute.xlu0 %649
        %v659 = vmul.f32 %v585, %v601
        %v660 = vmul.f32 %v586, %v608
        %v661 = vmul.f32 %v587, %v615
        %v662 = vmul.f32 %v588, %v622
        %v663 = vmul.f32 %v589, %v629
        %v664 = vmul.f32 %v590, %v636
        %v665 = vmul.f32 %v591, %v643
        %v666 = vmul.f32 %v592, %v650
        %675 = vset.pattern.permute.xlu0 0
        %676 = vperm.xlu0 %675, %v659
        %v677 = vpop.permute.xlu0 %676
        %678 = vset.pattern.permute.xlu0 0
        %679 = vperm.xlu0 %678, %v660
        %v680 = vpop.permute.xlu0 %679
        %681 = vset.pattern.permute.xlu0 0
        %682 = vperm.xlu0 %681, %v661
        %v683 = vpop.permute.xlu0 %682
        %684 = vset.pattern.permute.xlu0 0
        %685 = vperm.xlu0 %684, %v662
        %v686 = vpop.permute.xlu0 %685
        %687 = vset.pattern.permute.xlu0 0
        %688 = vperm.xlu0 %687, %v663
        %v689 = vpop.permute.xlu0 %688
        %690 = vset.pattern.permute.xlu0 0
        %691 = vperm.xlu0 %690, %v664
        %v692 = vpop.permute.xlu0 %691
        %693 = vset.pattern.permute.xlu0 0
        %694 = vperm.xlu0 %693, %v665
        %v695 = vpop.permute.xlu0 %694
        %696 = vset.pattern.permute.xlu0 0
        %697 = vperm.xlu0 %696, %v666
        %v698 = vpop.permute.xlu0 %697
        %v699 = vlaneseq
        %v700 = vshrl.u32 %v699, 7
        %v701 = vsub.s32 %v444, %v700
        %v702 = vrot.slane %v677, %v701
        %v703 = vlaneseq
        %v704 = vshrl.u32 %v703, 7
        %v705 = vsub.s32 %v444, %v704
        %v706 = vrot.slane %v680, %v705
        %v707 = vlaneseq
        %v708 = vshrl.u32 %v707, 7
        %v709 = vsub.s32 %v444, %v708
        %v710 = vrot.slane %v683, %v709
        %v711 = vlaneseq
        %v712 = vshrl.u32 %v711, 7
        %v713 = vsub.s32 %v444, %v712
        %v714 = vrot.slane %v686, %v713
        %v715 = vlaneseq
        %v716 = vshrl.u32 %v715, 7
        %v717 = vsub.s32 %v444, %v716
        %v718 = vrot.slane %v689, %v717
        %v719 = vlaneseq
        %v720 = vshrl.u32 %v719, 7
        %v721 = vsub.s32 %v444, %v720
        %v722 = vrot.slane %v692, %v721
        %v723 = vlaneseq
        %v724 = vshrl.u32 %v723, 7
        %v725 = vsub.s32 %v444, %v724
        %v726 = vrot.slane %v695, %v725
        %v727 = vlaneseq
        %v728 = vshrl.u32 %v727, 7
        %v729 = vsub.s32 %v444, %v728
        %v730 = vrot.slane %v698, %v729
        %vm731 = vcmask 1041409
        %v732 = vsel %vm731, %v706, %v702
        %vm733 = vcmask 1042434
        %v734 = vsel %vm733, %v710, %v732
        %vm735 = vcmask 1043459
        %v736 = vsel %vm735, %v714, %v734
        %vm737 = vcmask 1044484
        %v738 = vsel %vm737, %v718, %v736
        %vm739 = vcmask 1045509
        %v740 = vsel %vm739, %v722, %v738
        %vm741 = vcmask 1046534
        %v742 = vsel %vm741, %v726, %v740
        %vm743 = vcmask 1047559
        %v744 = vsel %vm743, %v730, %v742
        %v746 = vsel %vm448, %v744, 0.0
        %747 = vadd.xlane.f32.xlu0 %v746
        %v748 = vpop.xlane.xlu0 %747
        %v749 = vrot.slane %v748, 4
        %v750 = vadd.f32 %v748, %v749
        %v751 = vrot.slane %v750, 2
        %v752 = vadd.f32 %v750, %v751
        %v753 = vrot.slane %v752, 1
        %v754 = vadd.f32 %v752, %v753
        %s755 = vtos %v754
        %v756 = vstv %s755
        %v757 = vadd.f32 %v593, %v756
        %vm758 = vcmask 0
        %759 = vst.msk [vmem:[#allocation4] sm:$0x1] %vm758, %v757
        %v760 = vld [vmem:[#allocation5] sm:$0x1]
        %v761 = vsel %vm448, %v452, 0.0
        %762 = vadd.xlane.f32.xlu0 %v761
        %v763 = vpop.xlane.xlu0 %762
        %v764 = vrot.slane %v763, 4
        %v765 = vadd.f32 %v763, %v764
        %v766 = vrot.slane %v765, 2
        %v767 = vadd.f32 %v765, %v766
        %v768 = vrot.slane %v767, 1
        %v769 = vadd.f32 %v767, %v768
        %s770 = vtos %v769
        %v771 = vstv %s770
        %v772 = vadd.f32 %v760, %v771
        %773 = vst.msk [vmem:[#allocation5] sm:$0x1] %vm758, %v772
        // Predicated region
        $region57: #{tpu_custom_call.1} parent=43 // pred_check
          %p774 = pneg %p346
        $region58: #{tpu_custom_call.1} parent=43 // pred_check_branch
          %776 = sbr.rel (%p774) target = $region60
        $region59: #{tpu_custom_call.1} parent=43 // pred_region
          %v777 = vld [vmem:[#allocation5] sm:$0x1]
          %vm778 = vcmp.gt.f32.partialorder %v777, 0.0
          %v779 = vld [vmem:[#allocation6] sm:$0x1]
          %v780 = vld [vmem:[#allocation4] sm:$0x1]
          %v781 = vmax.f32 %v777, 1.0
          %v782 = vrcp.pop %v781
          %v783 = vmul.f32 %v780, %v782
          %v784 = vsel %vm778, %v783, 0.0
          %v785 = vadd.f32 %v779, %v784
          %786 = vst.msk [vmem:[#allocation6] sm:$0x1] %vm758, %v785
          %v787 = vld [vmem:[#allocation7] sm:$0x1]
          %v788 = vsel %vm778, 1.0, 0.0
          %v789 = vadd.f32 %v787, %v788
          %790 = vst.msk [vmem:[#allocation7] sm:$0x1] %vm758, %v789
        $region60: #{tpu_custom_call.1} parent=43 // pred_fallthru
          _
        %p791 = scmp.eq.s32.totalorder %s22, 2
        %p792 = pnand %p791, %p346
        %p793 = pneg %p792
        // Predicated region
        $region61: #{tpu_custom_call.1} parent=43 // pred_check
          _
        $region62: #{tpu_custom_call.1} parent=43 // pred_check_branch
          %795 = sbr.rel (%p792) target = $region64
        $region63: #{tpu_custom_call.1} parent=43 // pred_region
          %v796 = vld [vmem:[#allocation6] sm:$0x1]
          %v797 = vld [vmem:[#allocation7] sm:$0x1]
          %vm798 = vcmp.gt.f32.partialorder %v797, 0.0
          %v799 = vmax.f32 %v797, 1.0
          %v800 = vrcp.pop %v799
          %v801 = vmul.f32 %v796, %v800
          %v802 = vsel %vm798, %v801, %v796
          %v803 = vld [vmem:[#allocation2] sm:$0x1]
          %v804 = vld [vmem:[#allocation3] sm:$0x1]
          %v805 = vrcp.pop %v804
          %v806 = vmul.f32 %v803, %v805
          %v807 = vmul.f32 %v802, 0.01
          %v808 = vadd.f32 %v806, %v807
          %809 = vst.msk [vmem:[#allocation8] sm:$0x1] %vm758, %v808
        $region64: #{tpu_custom_call.1} parent=43 // pred_fallthru
          _
        // Predicated region
        $region65: #{tpu_custom_call.1} parent=43 // pred_check
          %p810 = pneg %p198
        $region66: #{tpu_custom_call.1} parent=43 // pred_check_branch
          %812 = sbr.rel (%p810) target = $region68
        $region67: #{tpu_custom_call.1} parent=43 // pred_region
          %s814 = ssub.s32 16, 16
          %815 = vsyncadd [#allocation9], %s814
          %s817 = sshll.u32 [#allocation8], 4
          %s818 = int_to_ptr.vmem [resolvable:$true] %s817
          %820 = dma.vmem_to_hbm [thread:$0]  %s818, 16, %s6, [#allocation9]
        $region68: #{tpu_custom_call.1} parent=43 // pred_fallthru
          _
        // Predicated region
        $region69: #{tpu_custom_call.1} parent=43 // pred_check
          %p821 = pneg %p198
        $region70: #{tpu_custom_call.1} parent=43 // pred_check_branch
          %823 = sbr.rel (%p821) target = $region72
        $region71: #{tpu_custom_call.1} parent=43 // pred_region
          %824 = dma.done [#allocation9], 16
        $region72: #{tpu_custom_call.1} parent=43 // pred_fallthru
          _
      $region44: #{tpu_custom_call.1} parent=5 // pred_fallthru
        _
      %p825 = scmp.le.s32.totalorder 2, %s13
      // Predicated region
      $region73: #{tpu_custom_call.1} parent=5 // pred_check
        %p826 = pneg %p825
      $region74: #{tpu_custom_call.1} parent=5 // pred_check_branch
        %828 = sbr.rel (%p826) target = $region76
      $region75: #{tpu_custom_call.1} parent=5 // pred_region
        %s829 = ssub.s32 %s13, 2
      $region76: #{tpu_custom_call.1} parent=5 // pred_fallthru
        _
    $region6: #{tpu_custom_call.1} parent=1 // loop_footer
      %s17 = sadd.s32 1, %s13
    $region7: #{tpu_custom_call.1} parent=1 // loop_footer_branch
      %12 = sbr.rel target = $region3
    $region8: #{tpu_custom_call.1} parent=1 // loop_exit
      _
    %830 = vsyncpa [#allocation9], 1
    %s831 = scalar_lea.sflag [#allocation9], 1
    %832 = vsyncpa %s831, 1

</llo_original>
